<compile_context>
chip_gen: v5e
topology: v5e:2x2
jax: 0.10.0
libtpu: 0.0.40
codegen_flags: <defaults>
</compile_context>

<pallas_src>
import functools

import numpy as np

import jax
import jax.numpy as jnp
from jax.experimental import pallas as pl
from jax.experimental.pallas import tpu as pltpu


def _round_up(a: int, m: int) -> int:
    return (a + m - 1) // m * m


@functools.lru_cache(maxsize=None)
def _fused_dft_basis_host(n: int, half: int, n_pad: int, w_pad: int):
    """Padded (n_pad, w_pad) fused DFT basis [cos | -sin], cached on HOST (f32).

    Host-side caching avoids pinning O(N^2) device HBM per distinct N; the
    device array is created per call (constant-folded when the wrapper is
    jitted).
    """
    idx = np.arange(n, dtype=np.float64)[:, None]            # (N, 1)
    k = np.arange(half, dtype=np.float64)[None, :]            # (1, half)
    ang = 2.0 * np.pi * idx * k / float(n)                    # (N, half)
    fused = np.concatenate([np.cos(ang), -np.sin(ang)], axis=1)   # (N, 2*half)
    padded = np.zeros((n_pad, w_pad), dtype=np.float64)
    padded[:n, : 2 * half] = fused
    return padded.astype(np.float32)


def _dft_kernel_single_k(x_ref, basis_ref, out_ref):
    """K grid has a single step: write the product directly."""
    out_ref[...] = jnp.dot(
        x_ref[...], basis_ref[...], preferred_element_type=jnp.float32
    )


def _dft_kernel_multi_k(x_ref, basis_ref, out_ref):
    """Accumulate directly into the f32 VMEM-resident output tile over K."""
    @pl.when(pl.program_id(2) == 0)
    def _init():
        out_ref[...] = jnp.zeros_like(out_ref)

    out_ref[...] += jnp.dot(
        x_ref[...], basis_ref[...], preferred_element_type=jnp.float32
    )


def fourier_layer(x, *, basis_dtype=None):
    """Returns complex64 array (B, N//2): first half of FFT(x, axis=-1)."""
    B, N = x.shape
    half = N // 2
    W = 2 * half                      # fused output width (re | im)

    if basis_dtype is None:
        # HBM-bound on the O(N^2) basis for realistic B -> bf16 for large N.
        basis_dtype = jnp.float32 if N < 256 else jnp.bfloat16
    basis_dtype = jnp.dtype(basis_dtype)
    is_bf16 = basis_dtype == jnp.bfloat16

    # Tile sizes: sublane multiple (16 for packed bf16 LHS, else 8), lane
    # multiple of 128.  Large tiles -> few grid steps, long contiguous DMAs.
    sublane = 16 if is_bf16 else 8
    TB = min(256, _round_up(B, sublane))
    B_pad = _round_up(B, TB)
    num_i = B_pad // TB

    TK = min(1024, _round_up(N, 128))
    N_pad = _round_up(N, TK)
    k_steps = N_pad // TK

    W_rounded = _round_up(W, 128)
    TN = min(1024, W_rounded)
    # v7x has 2 TensorCores: when there is only one batch tile, keep >= 2
    # "parallel" j tiles so the DFT shards across both cores.
    if num_i == 1 and W_rounded // TN < 2 and W_rounded >= 256:
        TN = max(128, _round_up(W_rounded // 2, 128))
    W_pad = _round_up(W, TN)
    num_j = W_pad // TN

    basis = jnp.asarray(
        _fused_dft_basis_host(N, half, N_pad, W_pad), dtype=basis_dtype
    )
    x_in = x.astype(basis_dtype)
    x_in = jnp.pad(x_in, ((0, B_pad - B), (0, N_pad - N)))

    kernel = _dft_kernel_single_k if k_steps == 1 else _dft_kernel_multi_k

    itemsize = basis_dtype.itemsize
    cost = pl.CostEstimate(
        flops=2 * B_pad * N_pad * W_pad,
        transcendentals=0,
        bytes_accessed=(
            B_pad * N_pad * itemsize      # x_in
            + N_pad * W_pad * itemsize    # basis (dominant term)
            + B_pad * W_pad * 4           # f32 output
        ),
    )

    out = pl.pallas_call(
        kernel,
        out_shape=jax.ShapeDtypeStruct((B_pad, W_pad), jnp.float32),
        grid_spec=pltpu.PrefetchScalarGridSpec(
            num_scalar_prefetch=0,
            grid=(num_i, num_j, k_steps),
            in_specs=[
                pl.BlockSpec((TB, TK), lambda i, j, k: (i, k)),
                pl.BlockSpec((TK, TN), lambda i, j, k: (k, j)),
            ],
            out_specs=pl.BlockSpec((TB, TN), lambda i, j, k: (i, j)),
        ),
        compiler_params=pltpu.CompilerParams(
            dimension_semantics=("parallel", "parallel", "arbitrary"),
            vmem_limit_bytes=32 * 1024 * 1024,   # safe on v7x's 64 MiB VMEM
        ),
        cost_estimate=cost,
    )(x_in, basis)

    out = out[:B, :W]                 # drop padded rows / lanes
    re = out[:, :half]
    im = out[:, half:W]
    return jax.lax.complex(re, im)    # complex64, matches torch.fft.fft(float32)


if __name__ == "__main__":
    key = jax.random.PRNGKey(0)

    # Shape from the original module: X = torch.randn(2, 8).  N < 256 ->
    # f32 basis by default, tight tolerance.
    x = jax.random.normal(key, (2, 8), dtype=jnp.float32)
    out = jax.block_until_ready(fourier_layer(x))
    ref = jnp.fft.fft(x)[..., : x.shape[-1] // 2].astype(jnp.complex64)
    assert out.shape == ref.shape and out.dtype == jnp.complex64
    assert jnp.allclose(out, ref, atol=1e-4, rtol=1e-4)

    # Larger shape exercising the multi-j-tile grid; explicit f32 basis for a
    # tight relative-error check.
    x2 = jax.random.normal(jax.random.PRNGKey(1), (4, 1024), dtype=jnp.float32)
    out2 = jax.block_until_ready(fourier_layer(x2, basis_dtype=jnp.float32))
    ref2 = jnp.fft.fft(x2)[..., :512].astype(jnp.complex64)
    rel_err = jnp.max(jnp.abs(out2 - ref2)) / jnp.max(jnp.abs(ref2))
    assert rel_err < 1e-3

    # Default path for N >= 256 is bf16 basis + bf16 x (half the HBM traffic);
    # f32 accumulation keeps the error modest but the input quantization
    # dominates -> looser tolerance.
    out2_bf16 = jax.block_until_ready(fourier_layer(x2))
    rel_err_bf16 = jnp.max(jnp.abs(out2_bf16 - ref2)) / jnp.max(jnp.abs(ref2))
    assert rel_err_bf16 < 5e-2

    print("KERNEL_OK")
</pallas_src>

<mosaic_0001>
module attributes {stable_mosaic.version = 11 : i64} {
  func.func @_dft_kernel_single_k(%arg0: i32, %arg1: i32, %arg2: i32, %arg3: memref<8x128xf32, #tpu.memory_space<vmem>>, %arg4: memref<128x128xf32, #tpu.memory_space<vmem>>, %arg5: memref<8x128xf32, #tpu.memory_space<vmem>>) attributes {dimension_semantics = [#tpu.dimension_semantics<parallel>, #tpu.dimension_semantics<parallel>, #tpu.dimension_semantics<arbitrary>], iteration_bounds = array<i64: 1, 1, 1>, scalar_prefetch = 0 : i64, scratch_operands = 0 : i64, tpu.core_type = #tpu.core_type<tc>, window_params = [{transform_indices = @transform_0, window_bounds = array<i64: 8, 128>}, {transform_indices = @transform_1, window_bounds = array<i64: 128, 128>}, {transform_indices = @transform_2, window_bounds = array<i64: 8, 128>}]} {
    %c0 = arith.constant 0 : index
    %c0_0 = arith.constant 0 : index
    %0 = vector.load %arg3[%c0, %c0_0] : memref<8x128xf32, #tpu.memory_space<vmem>>, vector<8x128xf32>
    %c0_1 = arith.constant 0 : index
    %c0_2 = arith.constant 0 : index
    %1 = vector.load %arg4[%c0_1, %c0_2] : memref<128x128xf32, #tpu.memory_space<vmem>>, vector<128x128xf32>
    %cst = arith.constant dense<0.000000e+00> : vector<8x128xf32>
    %2 = tpu.matmul %0, %1, %cst {dimension_numbers = #tpu.dot_dimension_numbers<[1], [0], [0], [1], [0, 0, 1, 1], [], []>} : vector<8x128xf32>, vector<128x128xf32>, vector<8x128xf32> -> vector<8x128xf32>
    %c0_3 = arith.constant 0 : index
    %c0_4 = arith.constant 0 : index
    %3 = vector.load %arg5[%c0_3, %c0_4] : memref<8x128xf32, #tpu.memory_space<vmem>>, vector<8x128xf32>
    tpu.vector_store %arg5[%c0_3, %c0_4], %2 {strides = array<i32>} : memref<8x128xf32, #tpu.memory_space<vmem>>, vector<8x128xf32>,
    return
  }
  func.func @transform_0(%arg0: i32, %arg1: i32, %arg2: i32) -> (i32, i32) {
    %c0_i32 = arith.constant 0 : i32
    return %arg0, %arg2 : i32, i32
  }
  func.func @transform_1(%arg0: i32, %arg1: i32, %arg2: i32) -> (i32, i32) {
    %c0_i32 = arith.constant 0 : i32
    return %arg2, %arg1 : i32, i32
  }
  func.func @transform_2(%arg0: i32, %arg1: i32, %arg2: i32) -> (i32, i32) {
    %c0_i32 = arith.constant 0 : i32
    return %arg0, %arg1 : i32, i32
  }
}

</mosaic_0001>

<llo_original>
// kernel: tpu_custom_call.1
$region0: #{tpu_custom_call.1}
  #allocation0 [shape = 'u32[]', space=smem, size = 0x4, offset = 0x4, fixed_abs, tag = 'smem constant byte address 0x4 - core index']
  #allocation1 [shape = 'u32[72,128]{1,0:T(1,128)}', space=vmem, size = 0x9000, scoped, tag = 'internal scratch']
  %s0 = inlined_call_operand.hbm [shape: f32[8,128], index: 0, kind: input, shape index: {}]
  %s1 = inlined_call_operand.hbm [shape: f32[128,128], index: 1, kind: input, shape index: {}]
  %s2 = inlined_call_operand.hbm [shape: f32[8,128], index: 2, kind: output, shape index: {}]
  %s3 = sld [smem:[#allocation0]]
  $region26: #{tpu_custom_call.1} parent=0
    _
  %s5 = ssub.s32 1, %s3
  %s6 = scalar_select 0, %s5, %s3
  $region1: #{tpu_custom_call.1} parent=0
    #allocation2 [shape = 'u8[4096]{0}', space=vmem, size = 0x1000, scoped, tag = 'input window, operand 0, single buffered']
    #allocation3 [shape = 's32[1]{0}', space=sflag, size = 0x4, scoped, tag = 'scoped memory for tpu_custom_call.1']
    #allocation4 [shape = 's32[1]{0}', space=sflag, size = 0x4, scoped, tag = 'scoped memory for tpu_custom_call.1']
    #allocation5 [shape = 'u8[65536]{0}', space=vmem, size = 0x10000, scoped, tag = 'input window, operand 1, single buffered']
    #allocation6 [shape = 's32[1]{0}', space=sflag, size = 0x4, scoped, tag = 'scoped memory for tpu_custom_call.1']
    #allocation7 [shape = 'u8[4096]{0}', space=vmem, size = 0x1000, scoped, tag = 'output window, operand 0, single buffered']
    %7 = vsyncpa [#allocation3], 0
    %8 = vsyncpa [#allocation6], 0
    %9 = vsyncpa [#allocation4], 0
    // Predicated region
    $region2: #{tpu_custom_call.1} parent=1 // pred_check
      _
    $region3: #{tpu_custom_call.1} parent=1 // pred_check_branch
      %11 = sbr.rel (0) target = $region5
    $region4: #{tpu_custom_call.1} parent=1 // pred_region
      %13 = vsyncadd [#allocation3], 0
      %s15 = sshll.u32 %s0, 4
      %s16 = int_to_ptr.hbm [resolvable:$true] %s15
      %s17 = sshll.u32 [#allocation2], 4
      %s18 = int_to_ptr.vmem [resolvable:$true] %s17
      %20 = dma.hbm_to_vmem [thread:$0]  %s16, 128, %s18, [#allocation3]
    $region5: #{tpu_custom_call.1} parent=1 // pred_fallthru
      _
    // Predicated region
    $region6: #{tpu_custom_call.1} parent=1 // pred_check
      _
    $region7: #{tpu_custom_call.1} parent=1 // pred_check_branch
      %22 = sbr.rel (0) target = $region9
    $region8: #{tpu_custom_call.1} parent=1 // pred_region
      %24 = vsyncadd [#allocation6], 0
      %s25 = sshll.u32 %s1, 4
      %s26 = int_to_ptr.hbm [resolvable:$true] %s25
      %s27 = sshll.u32 [#allocation5], 4
      %s28 = int_to_ptr.vmem [resolvable:$true] %s27
      %33 = dma.hbm_to_vmem [thread:$0]  %s26, 2048, %s28, [#allocation6], 128, 128, 8
    $region9: #{tpu_custom_call.1} parent=1 // pred_fallthru
      _
    // Predicated region
    $region10: #{tpu_custom_call.1} parent=1 // pred_check
      _
    $region11: #{tpu_custom_call.1} parent=1 // pred_check_branch
      %35 = sbr.rel (0) target = $region13
    $region12: #{tpu_custom_call.1} parent=1 // pred_region
      %37 = dma.done [#allocation3], 128
    $region13: #{tpu_custom_call.1} parent=1 // pred_fallthru
      _
    // Predicated region
    $region14: #{tpu_custom_call.1} parent=1 // pred_check
      _
    $region15: #{tpu_custom_call.1} parent=1 // pred_check_branch
      %39 = sbr.rel (0) target = $region17
    $region16: #{tpu_custom_call.1} parent=1 // pred_region
      %41 = dma.done [#allocation6], 2048
    $region17: #{tpu_custom_call.1} parent=1 // pred_fallthru
      _
    %v42 = vld [vmem:[#allocation2] sm:$0xff]
    %v43 = vld [vmem:[#allocation5] sm:$0xff]
    %v44 = vld [vmem:[#allocation5 + $0x8] sm:$0xff]
    %v45 = vld [vmem:[#allocation5 + $0x10] sm:$0xff]
    %v46 = vld [vmem:[#allocation5 + $0x18] sm:$0xff]
    %v47 = vld [vmem:[#allocation5 + $0x20] sm:$0xff]
    %v48 = vld [vmem:[#allocation5 + $0x28] sm:$0xff]
    %v49 = vld [vmem:[#allocation5 + $0x30] sm:$0xff]
    %v50 = vld [vmem:[#allocation5 + $0x38] sm:$0xff]
    %v51 = vld [vmem:[#allocation5 + $0x40] sm:$0xff]
    %v52 = vld [vmem:[#allocation5 + $0x48] sm:$0xff]
    %v53 = vld [vmem:[#allocation5 + $0x50] sm:$0xff]
    %v54 = vld [vmem:[#allocation5 + $0x58] sm:$0xff]
    %v55 = vld [vmem:[#allocation5 + $0x60] sm:$0xff]
    %v56 = vld [vmem:[#allocation5 + $0x68] sm:$0xff]
    %v57 = vld [vmem:[#allocation5 + $0x70] sm:$0xff]
    %v58 = vld [vmem:[#allocation5 + $0x78] sm:$0xff]
    %59 = vmatpush.msra.mxu0 %v58
    %60 = vmatpush.msra.mxu0 %v57
    %61 = vmatpush.msra.mxu0 %v56
    %62 = vmatpush.msra.mxu0 %v55
    %63 = vmatpush.msra.mxu0 %v54
    %64 = vmatpush.msra.mxu0 %v53
    %65 = vmatpush.msra.mxu0 %v52
    %66 = vmatpush.msra.mxu0 %v51
    %67 = vmatpush.msra.mxu0 %v50
    %68 = vmatpush.msra.mxu0 %v49
    %69 = vmatpush.msra.mxu0 %v48
    %70 = vmatpush.msra.mxu0 %v47
    %71 = vmatpush.msra.mxu0 %v46
    %72 = vmatpush.msra.mxu0 %v45
    %73 = vmatpush.msra.mxu0 %v44
    %74 = vmatpush.msra.mxu0 %v43
    %75 = vmatmul.f32.gmra.mxu0 %v42
    %v76 = vpop.f32.mrf.mxu0
    %v77 = vadd.f32 0.0, %v76
    %78 = vdwg.mxu0
    %79 = vst [vmem:[#allocation7] sm:$0xff] %v77
    // Predicated region
    $region18: #{tpu_custom_call.1} parent=1 // pred_check
      _
    $region19: #{tpu_custom_call.1} parent=1 // pred_check_branch
      %81 = sbr.rel (0) target = $region21
    $region20: #{tpu_custom_call.1} parent=1 // pred_region
      %83 = vsyncadd [#allocation4], 0
      %s85 = sshll.u32 [#allocation7], 4
      %s86 = int_to_ptr.vmem [resolvable:$true] %s85
      %s87 = sshll.u32 %s2, 4
      %s88 = int_to_ptr.hbm [resolvable:$true] %s87
      %90 = dma.vmem_to_hbm [thread:$0]  %s86, 128, %s88, [#allocation4]
    $region21: #{tpu_custom_call.1} parent=1 // pred_fallthru
      _
    // Predicated region
    $region22: #{tpu_custom_call.1} parent=1 // pred_check
      _
    $region23: #{tpu_custom_call.1} parent=1 // pred_check_branch
      %92 = sbr.rel (0) target = $region25
    $region24: #{tpu_custom_call.1} parent=1 // pred_region
      %94 = dma.done [#allocation4], 128
    $region25: #{tpu_custom_call.1} parent=1 // pred_fallthru
      _
    %95 = vsyncpa [#allocation3], 1
    %96 = vsyncpa [#allocation6], 1
    %97 = vsyncpa [#allocation4], 1

</llo_original>
